<compile_context>
chip_gen: v7x
topology: tpu7x:2x2x1
jax: 0.10.0
libtpu: 0.0.40
codegen_flags: <defaults>
</compile_context>

<pallas_src>
import jax
import jax.numpy as jnp
from jax.experimental import pallas as pl
from jax.experimental.pallas import tpu as pltpu


def cevae_kernel(
    # batch-tiled inputs
    x_ref, ty_ref, eps_ref,
    # weights (resident across the grid)
    wqz_x_ref,      # (D, Z)
    enc_rows_ref,   # (4, Z)  rows: [wqz_t, wqz_y, bqz, exp(z_logstd)]
    w_dec_ref,      # (Z, D+2) = [Wx | Wt | Wy_z]
    wy_t_row_ref,   # (1, D+2) zeros except wy_t at column D+1
    # single fused batch-tiled output
    out_ref,        # (TB, Z + D + 2) = [z_mean | x_pred | t_pred | y_pred]
):
    x = x_ref[...]          # (TB, D)
    ty = ty_ref[...]        # (TB, 2)  columns [t, y]
    eps = eps_ref[...]      # (TB, Z)

    t_col = ty[:, 0:1]      # (TB, 1)
    y_col = ty[:, 1:2]      # (TB, 1)

    wqz_t_row = enc_rows_ref[0:1, :]   # (1, Z)
    wqz_y_row = enc_rows_ref[1:2, :]   # (1, Z)
    bqz_row = enc_rows_ref[2:3, :]     # (1, Z)
    z_std_row = enc_rows_ref[3:4, :]   # (1, Z)  = exp(z_logstd), precomputed

    # ---- Encoder: one MXU dot + VPU broadcast-FMAs for the K=2 part ----
    z_mean = (
        jnp.dot(x, wqz_x_ref[...], preferred_element_type=jnp.float32)  # (TB, Z)
        + t_col * wqz_t_row
        + y_col * wqz_y_row
        + bqz_row
    )

    # ---- Reparameterize: implicit (1,Z) row broadcast, no broadcast_to ----
    z = eps * z_std_row + z_mean                                        # (TB, Z)

    # ---- Decoder: one MXU dot + VPU FMA adding t*wy_t into the y column ----
    dec = (
        jnp.dot(z, w_dec_ref[...], preferred_element_type=jnp.float32)  # (TB, D+2)
        + t_col * wy_t_row_ref[...]
    )

    # single fused store: [z_mean | x_pred | t_pred | y_pred]
    out_ref[...] = jnp.concatenate([z_mean, dec], axis=1).astype(out_ref.dtype)


def _round_up(a, m):
    return ((a + m - 1) // m) * m


def _pick_batch_tile(bs, cap=4096):
    """Batch tile (multiple of 8).

    Lane-padded VMEM cost is ~TB*4 KiB (4 batch-tiled blocks, double-buffered),
    so cap=4096 keeps the tile well inside a 32 MiB scoped VMEM budget on all
    generations.  For batches >= 1024 split into >= 2 tiles so v7x's two
    TensorCores can both get work via dimension_semantics=("parallel",).
    """
    bs8 = _round_up(bs, 8)
    if bs8 <= cap:
        if bs8 >= 1024:
            return _round_up(bs8 // 2, 8)
        return bs8
    return cap


def linear_cevae_forward(x, t, y, eps, params, expand_stds=True):
    bs, D = x.shape
    Z = params["wqz_x"].shape[1]

    # --- wrapper-side packing / weight fusion (parameter-sized, negligible) ---
    ty = jnp.concatenate([t, y], axis=1)                                  # (bs, 2)
    z_std_row = jnp.exp(params["z_logstd"])                              # (1, Z)
    enc_rows = jnp.concatenate(
        [params["wqz_t"], params["wqz_y"], params["bqz"], z_std_row], axis=0
    )                                                                     # (4, Z)
    w_dec = jnp.concatenate(
        [params["wx"], params["wt"], params["wy_z"]], axis=1)             # (Z, D+2)
    wy_t_row = jnp.zeros((1, D + 2), jnp.float32).at[0, D + 1].set(
        params["wy_t"][0, 0])                                              # (1, D+2)

    # --- batch tiling with zero-padding to a multiple of the tile ---
    TB = _pick_batch_tile(bs)
    padded_bs = _round_up(bs, TB)
    if padded_bs != bs:
        pad = padded_bs - bs
        x_p = jnp.pad(x, ((0, pad), (0, 0)))
        ty_p = jnp.pad(ty, ((0, pad), (0, 0)))
        eps_p = jnp.pad(eps, ((0, pad), (0, 0)))
    else:
        x_p, ty_p, eps_p = x, ty, eps
    grid = (padded_bs // TB,)

    def batch_spec(cols):
        return pl.BlockSpec((TB, cols), lambda i: (i, 0))

    def weight_spec(arr):
        return pl.BlockSpec(arr.shape, lambda i: (0, 0))

    out_slab = pl.pallas_call(
        cevae_kernel,
        out_shape=jax.ShapeDtypeStruct((padded_bs, Z + D + 2), jnp.float32),
        grid=grid,
        in_specs=[
            batch_spec(D),                 # x
            batch_spec(2),                 # ty
            batch_spec(Z),                 # eps
            weight_spec(params["wqz_x"]),  # (D, Z)
            weight_spec(enc_rows),         # (4, Z)
            weight_spec(w_dec),            # (Z, D+2)
            weight_spec(wy_t_row),         # (1, D+2)
        ],
        out_specs=batch_spec(Z + D + 2),
        compiler_params=pltpu.CompilerParams(
            dimension_semantics=("parallel",),   # shard batch tiles across TCs (v7x)
            vmem_limit_bytes=32 << 20,           # safe on v5e/v6e/v7x at TB<=4096
        ),
    )(x_p, ty_p, eps_p, params["wqz_x"], enc_rows, w_dec, wy_t_row)

    # split the fused slab (and drop any batch padding)
    z_mean = out_slab[:bs, :Z]
    x_pred = out_slab[:bs, Z:Z + D]
    t_pred = out_slab[:bs, Z + D:Z + D + 1]
    y_pred = out_slab[:bs, Z + D + 1:Z + D + 2]

    # --- parameter-only std rows; expand only if torch-shaped outputs needed ---
    x_std_row = jnp.exp(params["x_log_std"])   # (1, D)
    t_std_row = jnp.exp(params["t_log_std"])   # (1, 1)
    y_std_row = jnp.exp(params["y_log_std"])   # (1, 1)
    if expand_stds:
        z_std = jnp.broadcast_to(z_std_row, (bs, Z))
        x_std = jnp.broadcast_to(x_std_row, (bs, D))
        t_std = jnp.broadcast_to(t_std_row, (bs, 1))
        y_std = jnp.broadcast_to(y_std_row, (bs, 1))
    else:
        z_std, x_std, t_std, y_std = z_std_row, x_std_row, t_std_row, y_std_row

    return (z_mean, z_std, x_pred, t_pred, y_pred, x_std, t_std, y_std)


def init_params(key, input_dim, z_dim):
    """Deterministic parameter init mirroring the torch module's shapes."""
    ks = jax.random.split(key, 5)
    D, Z = input_dim, z_dim

    # Encoder q_z_nn: Linear(D+2, Z): weight (Z, D+2), bias (Z,)
    bound = 1.0 / jnp.sqrt(D + 2.0)
    w_qz = jax.random.uniform(ks[0], (Z, D + 2), jnp.float32, -bound, bound)
    b_qz = jax.random.uniform(ks[1], (Z,), jnp.float32, -bound, bound)

    # Decoder x_nns: D x Linear(Z, 1, bias=False) -> stacked weight (D, Z)
    bz = 1.0 / jnp.sqrt(float(Z))
    w_x = jax.random.uniform(ks[2], (D, Z), jnp.float32, -bz, bz)

    # Decoder t_nn: Linear(Z, 1, bias=False): weight (1, Z)
    w_t = jax.random.uniform(ks[3], (1, Z), jnp.float32, -bz, bz)

    # Decoder y_nn: Linear(Z+1, 1, bias=False): weight (1, Z+1)
    by = 1.0 / jnp.sqrt(Z + 1.0)
    w_y = jax.random.uniform(ks[4], (1, Z + 1), jnp.float32, -by, by)

    params = {
        # encoder weight split over [x | t | y]
        "wqz_x": w_qz[:, :D].T,                      # (D, Z)
        "wqz_t": w_qz[:, D:D + 1].T,                 # (1, Z)
        "wqz_y": w_qz[:, D + 1:D + 2].T,             # (1, Z)
        "bqz": b_qz.reshape(1, Z),                   # (1, Z)
        "z_logstd": jnp.ones((1, Z), jnp.float32),   # torch.ones(z_dim)
        # decoder
        "wx": w_x.T,                                 # (Z, D)
        "x_log_std": jnp.ones((1, D), jnp.float32),  # FloatTensor(input_dim*[1.0])
        "wt": w_t.T,                                 # (Z, 1)
        "t_log_std": jnp.ones((1, 1), jnp.float32),
        "wy_z": w_y[:, :Z].T,                        # (Z, 1)
        "wy_t": w_y[:, Z:].reshape(1, 1),            # (1, 1)
        "y_log_std": jnp.ones((1, 1), jnp.float32),
    }
    return params


def reference_forward(x, t, y, eps, p):
    """Pure-JAX reference (matches torch semantics)."""
    z_mean = x @ p["wqz_x"] + t * p["wqz_t"] + y * p["wqz_y"] + p["bqz"]
    z_std = jnp.broadcast_to(jnp.exp(p["z_logstd"]), z_mean.shape)
    z = eps * z_std + z_mean
    x_pred = z @ p["wx"]
    x_std = jnp.broadcast_to(jnp.exp(p["x_log_std"]), x_pred.shape)
    t_pred = z @ p["wt"]
    t_std = jnp.broadcast_to(jnp.exp(p["t_log_std"]), t_pred.shape)
    y_pred = z @ p["wy_z"] + t * p["wy_t"]
    y_std = jnp.broadcast_to(jnp.exp(p["y_log_std"]), y_pred.shape)
    return (z_mean, z_std, x_pred, t_pred, y_pred, x_std, t_std, y_std)


if __name__ == "__main__":
    bs, input_dim, z_dim = 8, 16, 4

    key = jax.random.PRNGKey(0)
    k_x, k_t, k_y, k_eps, k_p = jax.random.split(key, 5)

    x = jax.random.normal(k_x, (bs, input_dim), jnp.float32)
    t = jax.random.normal(k_t, (bs, 1), jnp.float32)
    y = jax.random.normal(k_y, (bs, 1), jnp.float32)
    # reparameterization noise (torch.randn_like(z_std)) sampled in glue code
    eps = jax.random.normal(k_eps, (bs, z_dim), jnp.float32)

    params = init_params(k_p, input_dim, z_dim)

    outs = linear_cevae_forward(x, t, y, eps, params)
    outs = jax.block_until_ready(outs)

    refs = reference_forward(x, t, y, eps, params)
    for o, r in zip(outs, refs):
        assert o.shape == r.shape, (o.shape, r.shape)
        assert jnp.allclose(o, r, atol=1e-5, rtol=1e-5)

    print("KERNEL_OK")
</pallas_src>

<mosaic_0001>
module attributes {stable_mosaic.version = 11 : i64} {
  func.func @cevae_kernel(%arg0: i32, %arg1: memref<8x16xf32, #tpu.memory_space<vmem>>, %arg2: memref<8x2xf32, #tpu.memory_space<vmem>>, %arg3: memref<8x4xf32, #tpu.memory_space<vmem>>, %arg4: memref<16x4xf32, #tpu.memory_space<vmem>>, %arg5: memref<4x4xf32, #tpu.memory_space<vmem>>, %arg6: memref<4x18xf32, #tpu.memory_space<vmem>>, %arg7: memref<1x18xf32, #tpu.memory_space<vmem>>, %arg8: memref<8x22xf32, #tpu.memory_space<vmem>>) attributes {dimension_semantics = [#tpu.dimension_semantics<parallel>], iteration_bounds = array<i64: 1>, scalar_prefetch = 0 : i64, scratch_operands = 0 : i64, tpu.core_type = #tpu.core_type<tc>, window_params = [{transform_indices = @transform_0, window_bounds = array<i64: 8, 16>}, {transform_indices = @transform_1, window_bounds = array<i64: 8, 2>}, {transform_indices = @transform_2, window_bounds = array<i64: 8, 4>}, {pipeline_mode = #tpu.pipeline_mode<synchronous>, transform_indices = @transform_3, window_bounds = array<i64: 16, 4>}, {pipeline_mode = #tpu.pipeline_mode<synchronous>, transform_indices = @transform_4, window_bounds = array<i64: 4, 4>}, {pipeline_mode = #tpu.pipeline_mode<synchronous>, transform_indices = @transform_5, window_bounds = array<i64: 4, 18>}, {pipeline_mode = #tpu.pipeline_mode<synchronous>, transform_indices = @transform_6, window_bounds = array<i64: 1, 18>}, {transform_indices = @transform_7, window_bounds = array<i64: 8, 22>}]} {
    %c0 = arith.constant 0 : index
    %c0_0 = arith.constant 0 : index
    %0 = vector.load %arg1[%c0, %c0_0] : memref<8x16xf32, #tpu.memory_space<vmem>>, vector<8x16xf32>
    %c0_1 = arith.constant 0 : index
    %c0_2 = arith.constant 0 : index
    %1 = vector.load %arg2[%c0_1, %c0_2] : memref<8x2xf32, #tpu.memory_space<vmem>>, vector<8x2xf32>
    %c0_3 = arith.constant 0 : index
    %c0_4 = arith.constant 0 : index
    %2 = vector.load %arg3[%c0_3, %c0_4] : memref<8x4xf32, #tpu.memory_space<vmem>>, vector<8x4xf32>
    %3 = vector.extract_strided_slice %1 {offsets = [0, 0], sizes = [8, 1], strides = [1, 1]} : vector<8x2xf32> to vector<8x1xf32>
    %4 = vector.extract_strided_slice %1 {offsets = [0, 1], sizes = [8, 1], strides = [1, 1]} : vector<8x2xf32> to vector<8x1xf32>
    %c0_5 = arith.constant 0 : index
    %c0_6 = arith.constant 0 : index
    %5 = vector.load %arg5[%c0_5, %c0_6] : memref<4x4xf32, #tpu.memory_space<vmem>>, vector<1x4xf32>
    %c1 = arith.constant 1 : index
    %c0_7 = arith.constant 0 : index
    %6 = vector.load %arg5[%c1, %c0_7] : memref<4x4xf32, #tpu.memory_space<vmem>>, vector<1x4xf32>
    %c2 = arith.constant 2 : index
    %c0_8 = arith.constant 0 : index
    %7 = vector.load %arg5[%c2, %c0_8] : memref<4x4xf32, #tpu.memory_space<vmem>>, vector<1x4xf32>
    %c3 = arith.constant 3 : index
    %c0_9 = arith.constant 0 : index
    %8 = vector.load %arg5[%c3, %c0_9] : memref<4x4xf32, #tpu.memory_space<vmem>>, vector<1x4xf32>
    %c0_10 = arith.constant 0 : index
    %c0_11 = arith.constant 0 : index
    %9 = vector.load %arg4[%c0_10, %c0_11] : memref<16x4xf32, #tpu.memory_space<vmem>>, vector<16x4xf32>
    %cst = arith.constant dense<0.000000e+00> : vector<8x4xf32>
    %10 = tpu.matmul %0, %9, %cst {dimension_numbers = #tpu.dot_dimension_numbers<[1], [0], [0], [1], [0, 0, 1, 1], [], []>} : vector<8x16xf32>, vector<16x4xf32>, vector<8x4xf32> -> vector<8x4xf32>
    %11 = vector.broadcast %3 : vector<8x1xf32> to vector<8x4xf32>
    %12 = vector.broadcast %5 : vector<1x4xf32> to vector<8x4xf32>
    %13 = arith.mulf %11, %12 : vector<8x4xf32>
    %14 = arith.addf %10, %13 : vector<8x4xf32>
    %15 = vector.broadcast %4 : vector<8x1xf32> to vector<8x4xf32>
    %16 = vector.broadcast %6 : vector<1x4xf32> to vector<8x4xf32>
    %17 = arith.mulf %15, %16 : vector<8x4xf32>
    %18 = arith.addf %14, %17 : vector<8x4xf32>
    %19 = vector.broadcast %7 : vector<1x4xf32> to vector<8x4xf32>
    %20 = arith.addf %18, %19 : vector<8x4xf32>
    %21 = vector.broadcast %8 : vector<1x4xf32> to vector<8x4xf32>
    %22 = arith.mulf %2, %21 : vector<8x4xf32>
    %23 = arith.addf %22, %20 : vector<8x4xf32>
    %c0_12 = arith.constant 0 : index
    %c0_13 = arith.constant 0 : index
    %24 = vector.load %arg6[%c0_12, %c0_13] : memref<4x18xf32, #tpu.memory_space<vmem>>, vector<4x18xf32>
    %cst_14 = arith.constant dense<0.000000e+00> : vector<8x18xf32>
    %25 = tpu.matmul %23, %24, %cst_14 {dimension_numbers = #tpu.dot_dimension_numbers<[1], [0], [0], [1], [0, 0, 1, 1], [], []>} : vector<8x4xf32>, vector<4x18xf32>, vector<8x18xf32> -> vector<8x18xf32>
    %c0_15 = arith.constant 0 : index
    %c0_16 = arith.constant 0 : index
    %26 = vector.load %arg7[%c0_15, %c0_16] : memref<1x18xf32, #tpu.memory_space<vmem>>, vector<1x18xf32>
    %27 = vector.broadcast %3 : vector<8x1xf32> to vector<8x18xf32>
    %28 = vector.broadcast %26 : vector<1x18xf32> to vector<8x18xf32>
    %29 = arith.mulf %27, %28 : vector<8x18xf32>
    %30 = arith.addf %25, %29 : vector<8x18xf32>
    %31 = tpu.concatenate %20, %30 in 1 : vector<8x4xf32>, vector<8x18xf32> -> vector<8x22xf32>
    %c0_17 = arith.constant 0 : index
    %c0_18 = arith.constant 0 : index
    %32 = vector.load %arg8[%c0_17, %c0_18] : memref<8x22xf32, #tpu.memory_space<vmem>>, vector<8x22xf32>
    tpu.vector_store %arg8[%c0_17, %c0_18], %31 {strides = array<i32>} : memref<8x22xf32, #tpu.memory_space<vmem>>, vector<8x22xf32>,
    return
  }
  func.func @transform_0(%arg0: i32) -> (i32, i32) {
    %c0_i32 = arith.constant 0 : i32
    %c0_i32_0 = arith.constant 0 : i32
    return %arg0, %c0_i32 : i32, i32
  }
  func.func @transform_1(%arg0: i32) -> (i32, i32) {
    %c0_i32 = arith.constant 0 : i32
    %c0_i32_0 = arith.constant 0 : i32
    return %arg0, %c0_i32 : i32, i32
  }
  func.func @transform_2(%arg0: i32) -> (i32, i32) {
    %c0_i32 = arith.constant 0 : i32
    %c0_i32_0 = arith.constant 0 : i32
    return %arg0, %c0_i32 : i32, i32
  }
  func.func @transform_3(%arg0: i32) -> (i32, i32) {
    %c0_i32 = arith.constant 0 : i32
    %c0_i32_0 = arith.constant 0 : i32
    %c0_i32_1 = arith.constant 0 : i32
    return %c0_i32, %c0_i32_0 : i32, i32
  }
  func.func @transform_4(%arg0: i32) -> (i32, i32) {
    %c0_i32 = arith.constant 0 : i32
    %c0_i32_0 = arith.constant 0 : i32
    %c0_i32_1 = arith.constant 0 : i32
    return %c0_i32, %c0_i32_0 : i32, i32
  }
  func.func @transform_5(%arg0: i32) -> (i32, i32) {
    %c0_i32 = arith.constant 0 : i32
    %c0_i32_0 = arith.constant 0 : i32
    %c0_i32_1 = arith.constant 0 : i32
    return %c0_i32, %c0_i32_0 : i32, i32
  }
  func.func @transform_6(%arg0: i32) -> (i32, i32) {
    %c0_i32 = arith.constant 0 : i32
    %c0_i32_0 = arith.constant 0 : i32
    %c0_i32_1 = arith.constant 0 : i32
    return %c0_i32, %c0_i32_0 : i32, i32
  }
  func.func @transform_7(%arg0: i32) -> (i32, i32) {
    %c0_i32 = arith.constant 0 : i32
    %c0_i32_0 = arith.constant 0 : i32
    return %arg0, %c0_i32 : i32, i32
  }
}

</mosaic_0001>

<llo_original>
// kernel: tpu_custom_call.1
$region0: #{tpu_custom_call.1}
  #allocation0 [shape = 'u32[]', space=smem, size = 0x4, offset = 0x4, fixed_abs, tag = 'smem constant byte address 0x4 - core index']
  #allocation1 [shape = 'u32[144,128]{1,0:T(1,128)}', space=vmem, size = 0x12000, scoped, tag = 'internal scratch']
  %s0 = inlined_call_operand.vmem [shape: f32[8,16], index: 0, kind: input, shape index: {}]
  %s1 = inlined_call_operand.vmem [shape: f32[8,2], index: 1, kind: input, shape index: {}]
  %s2 = inlined_call_operand.vmem [shape: f32[8,4], index: 2, kind: input, shape index: {}]
  %s3 = inlined_call_operand.vmem [shape: f32[16,4], index: 3, kind: input, shape index: {}]
  %s4 = inlined_call_operand.vmem [shape: f32[4,4], index: 4, kind: input, shape index: {}]
  %s5 = inlined_call_operand.vmem [shape: f32[4,18], index: 5, kind: input, shape index: {}]
  %s6 = inlined_call_operand.vmem [shape: f32[1,18], index: 6, kind: input, shape index: {}]
  %s7 = inlined_call_operand.hbm [shape: f32[8,22], index: 7, kind: output, shape index: {}]
  %s8 = sld [smem:[#allocation0]]
  $region38: #{tpu_custom_call.1} parent=0
    _
  %s10 = ssub.s32 1, %s8
  %s11 = scalar_select 0, %s10, %s8
  $region1: #{tpu_custom_call.1} parent=0
    #allocation2 [shape = 'u8[4096]{0}', space=vmem, size = 0x1000, scoped, tag = 'output window, operand 0, single buffered']
    #allocation3 [shape = 's32[1]{0}', space=sflag, size = 0x4, scoped, tag = 'scoped memory for tpu_custom_call.1']
    %12 = vsyncpa [#allocation3], 0
    // Predicated region
    $region2: #{tpu_custom_call.1} parent=1 // pred_check
      _
    $region3: #{tpu_custom_call.1} parent=1 // pred_check_branch
      %14 = sbr.rel (0) target = $region5
    $region4: #{tpu_custom_call.1} parent=1 // pred_region
      _
    $region5: #{tpu_custom_call.1} parent=1 // pred_fallthru
      _
    // Predicated region
    $region6: #{tpu_custom_call.1} parent=1 // pred_check
      _
    $region7: #{tpu_custom_call.1} parent=1 // pred_check_branch
      %16 = sbr.rel (0) target = $region9
    $region8: #{tpu_custom_call.1} parent=1 // pred_region
      _
    $region9: #{tpu_custom_call.1} parent=1 // pred_fallthru
      _
    // Predicated region
    $region10: #{tpu_custom_call.1} parent=1 // pred_check
      _
    $region11: #{tpu_custom_call.1} parent=1 // pred_check_branch
      %18 = sbr.rel (0) target = $region13
    $region12: #{tpu_custom_call.1} parent=1 // pred_region
      _
    $region13: #{tpu_custom_call.1} parent=1 // pred_fallthru
      _
    // Predicated region
    $region14: #{tpu_custom_call.1} parent=1 // pred_check
      _
    $region15: #{tpu_custom_call.1} parent=1 // pred_check_branch
      %20 = sbr.rel (0) target = $region17
    $region16: #{tpu_custom_call.1} parent=1 // pred_region
      _
    $region17: #{tpu_custom_call.1} parent=1 // pred_fallthru
      _
    // Predicated region
    $region18: #{tpu_custom_call.1} parent=1 // pred_check
      _
    $region19: #{tpu_custom_call.1} parent=1 // pred_check_branch
      %22 = sbr.rel (0) target = $region21
    $region20: #{tpu_custom_call.1} parent=1 // pred_region
      _
    $region21: #{tpu_custom_call.1} parent=1 // pred_fallthru
      _
    // Predicated region
    $region22: #{tpu_custom_call.1} parent=1 // pred_check
      _
    $region23: #{tpu_custom_call.1} parent=1 // pred_check_branch
      %24 = sbr.rel (0) target = $region25
    $region24: #{tpu_custom_call.1} parent=1 // pred_region
      _
    $region25: #{tpu_custom_call.1} parent=1 // pred_fallthru
      _
    // Predicated region
    $region26: #{tpu_custom_call.1} parent=1 // pred_check
      _
    $region27: #{tpu_custom_call.1} parent=1 // pred_check_branch
      %26 = sbr.rel (0) target = $region29
    $region28: #{tpu_custom_call.1} parent=1 // pred_region
      _
    $region29: #{tpu_custom_call.1} parent=1 // pred_fallthru
      _
    %v27 = vld [vmem:[%s0] sm:$0xff]
    %v28 = vld [vmem:[%s1] sm:$0xff]
    %v29 = vld [vmem:[%s2] sm:$0xff]
    %v30 = vld [vmem:[%s4] sm:$0x1]
    %v31 = vld [vmem:[%s4 + $0x1] sm:$0x1]
    %v32 = vld [vmem:[%s4 + $0x2] sm:$0x1]
    %v33 = vld [vmem:[%s4 + $0x3] sm:$0x1]
    %v34 = vld [vmem:[%s3] sm:$0xff]
    %v35 = vld [vmem:[%s3 + $0x8] sm:$0xff]
    %37 = vset.pattern.permute.xlu0 0
    %38 = vperm.xlu0 %37, %v28
    %v39 = vpop.permute.xlu0 %38
    %v41 = vlaneseq
    %v42 = vshrl.u32 %v41, 7
    %v43 = vsub.s32 0, %v42
    %v44 = vrot.slane %v30, %v43
    %v45 = vmul.f32 %v39, %v44
    %vm46 = vcmask 130048
    %v48 = vsel %vm46, %v27, 0
    %50 = vmatprep.subr.mxu0 0.0
    %51 = vmatpush1.msra.mxu0 %v34
    %52 = vmatprep.subr.mxu0 0.0
    %53 = vmatpush1.msra.mxu0 %v35
    %54 = vmatprep.subr.mxu0 0.0
    %55 = vmatpush1.msra.mxu0 0.0
    %56 = vmatprep.subr.mxu0 0.0
    %57 = vmatpush1.msra.mxu0 0.0
    %58 = vmatprep.subr.mxu0 0.0
    %59 = vmatpush1.msra.mxu0 0.0
    %60 = vmatprep.subr.mxu0 0.0
    %61 = vmatpush1.msra.mxu0 0.0
    %62 = vmatprep.subr.mxu0 0.0
    %63 = vmatpush1.msra.mxu0 0.0
    %64 = vmatprep.subr.mxu0 0.0
    %65 = vmatpush1.msra.mxu0 0.0
    %66 = vmatprep.subr.mxu0 0.0
    %67 = vmatpush1.msra.mxu0 0.0
    %68 = vmatprep.subr.mxu0 0.0
    %69 = vmatpush1.msra.mxu0 0.0
    %70 = vmatprep.subr.mxu0 0.0
    %71 = vmatpush1.msra.mxu0 0.0
    %72 = vmatprep.subr.mxu0 0.0
    %73 = vmatpush1.msra.mxu0 0.0
    %74 = vmatprep.subr.mxu0 0.0
    %75 = vmatpush1.msra.mxu0 0.0
    %76 = vmatprep.subr.mxu0 0.0
    %77 = vmatpush1.msra.mxu0 0.0
    %78 = vmatprep.subr.mxu0 0.0
    %79 = vmatpush1.msra.mxu0 0.0
    %80 = vmatprep.subr.mxu0 0.0
    %81 = vmatpush1.msra.mxu0 0.0
    %82 = vmatprep.subr.mxu0 0.0
    %83 = vmatpush1.msra.mxu0 0.0
    %84 = vmatprep.subr.mxu0 0.0
    %85 = vmatpush1.msra.mxu0 0.0
    %86 = vmatprep.subr.mxu0 0.0
    %87 = vmatpush1.msra.mxu0 0.0
    %88 = vmatprep.subr.mxu0 0.0
    %89 = vmatpush1.msra.mxu0 0.0
    %90 = vmatprep.subr.mxu0 0.0
    %91 = vmatpush1.msra.mxu0 0.0
    %92 = vmatprep.subr.mxu0 0.0
    %93 = vmatpush1.msra.mxu0 0.0
    %94 = vmatprep.subr.mxu0 0.0
    %95 = vmatpush1.msra.mxu0 0.0
    %96 = vmatprep.subr.mxu0 0.0
    %97 = vmatpush1.msra.mxu0 0.0
    %98 = vmatprep.subr.mxu0 0.0
    %99 = vmatpush1.msra.mxu0 0.0
    %100 = vmatprep.subr.mxu0 0.0
    %101 = vmatpush1.msra.mxu0 0.0
    %102 = vmatprep.subr.mxu0 0.0
    %103 = vmatpush1.msra.mxu0 0.0
    %104 = vmatprep.subr.mxu0 0.0
    %105 = vmatpush1.msra.mxu0 0.0
    %106 = vmatprep.subr.mxu0 0.0
    %107 = vmatpush1.msra.mxu0 0.0
    %108 = vmatprep.subr.mxu0 0.0
    %109 = vmatpush1.msra.mxu0 0.0
    %110 = vmatprep.subr.mxu0 0.0
    %111 = vmatpush1.msra.mxu0 0.0
    %112 = vmatprep.subr.mxu0 0.0
    %113 = vmatpush1.msra.mxu0 0.0
    %114 = vmatprep.mubr.f32.mxu0 0.0
    %115 = vmatmul.mubr.f32.gmra.mrb[0].mxu0 %v48
    %v116 = vpop.f32.mrb[0].mxu0
    %v117 = vadd.f32 %v45, %v116
    %v118 = vpop.f32.mrb[0].mxu0
    %119 = vdwg.mxu0
    %120 = vset.pattern.permute.xlu0 1
    %121 = vperm.xlu0 %120, %v28
    %v122 = vpop.permute.xlu0 %121
    %v124 = vlaneseq
    %v125 = vshrl.u32 %v124, 7
    %v126 = vsub.s32 0, %v125
    %v127 = vrot.slane %v31, %v126
    %v128 = vmul.f32 %v122, %v127
    %v129 = vadd.f32 %v117, %v128
    %v130 = vlaneseq
    %v131 = vshrl.u32 %v130, 7
    %v132 = vsub.s32 0, %v131
    %v133 = vrot.slane %v32, %v132
    %v134 = vadd.f32 %v129, %v133
    %v135 = vlaneseq
    %v136 = vshrl.u32 %v135, 7
    %v137 = vsub.s32 0, %v136
    %v138 = vrot.slane %v33, %v137
    %v139 = vmul.f32 %v29, %v138
    %v140 = vadd.f32 %v139, %v134
    %v141 = vld [vmem:[%s5] sm:$0xf]
    %v142 = vld [vmem:[%s6] sm:$0x1]
    %v144 = vlaneseq
    %v145 = vshrl.u32 %v144, 7
    %v146 = vsub.s32 0, %v145
    %v147 = vrot.slane %v142, %v146
    %v149 = vmul.f32 %v39, %v147
    %vm150 = vcmask 31744
    %v152 = vsel %vm150, %v140, 0
    %vm154 = vcmask 1043456
    %v156 = vsel %vm154, %v141, 0
    %158 = vmatprep.subr.mxu0 0.0
    %159 = vmatpush1.msra.mxu0 %v156
    %160 = vmatprep.subr.mxu0 0.0
    %161 = vmatpush1.msra.mxu0 0.0
    %162 = vmatprep.subr.mxu0 0.0
    %163 = vmatpush1.msra.mxu0 0.0
    %164 = vmatprep.subr.mxu0 0.0
    %165 = vmatpush1.msra.mxu0 0.0
    %166 = vmatprep.subr.mxu0 0.0
    %167 = vmatpush1.msra.mxu0 0.0
    %168 = vmatprep.subr.mxu0 0.0
    %169 = vmatpush1.msra.mxu0 0.0
    %170 = vmatprep.subr.mxu0 0.0
    %171 = vmatpush1.msra.mxu0 0.0
    %172 = vmatprep.subr.mxu0 0.0
    %173 = vmatpush1.msra.mxu0 0.0
    %174 = vmatprep.subr.mxu0 0.0
    %175 = vmatpush1.msra.mxu0 0.0
    %176 = vmatprep.subr.mxu0 0.0
    %177 = vmatpush1.msra.mxu0 0.0
    %178 = vmatprep.subr.mxu0 0.0
    %179 = vmatpush1.msra.mxu0 0.0
    %180 = vmatprep.subr.mxu0 0.0
    %181 = vmatpush1.msra.mxu0 0.0
    %182 = vmatprep.subr.mxu0 0.0
    %183 = vmatpush1.msra.mxu0 0.0
    %184 = vmatprep.subr.mxu0 0.0
    %185 = vmatpush1.msra.mxu0 0.0
    %186 = vmatprep.subr.mxu0 0.0
    %187 = vmatpush1.msra.mxu0 0.0
    %188 = vmatprep.subr.mxu0 0.0
    %189 = vmatpush1.msra.mxu0 0.0
    %190 = vmatprep.subr.mxu0 0.0
    %191 = vmatpush1.msra.mxu0 0.0
    %192 = vmatprep.subr.mxu0 0.0
    %193 = vmatpush1.msra.mxu0 0.0
    %194 = vmatprep.subr.mxu0 0.0
    %195 = vmatpush1.msra.mxu0 0.0
    %196 = vmatprep.subr.mxu0 0.0
    %197 = vmatpush1.msra.mxu0 0.0
    %198 = vmatprep.subr.mxu0 0.0
    %199 = vmatpush1.msra.mxu0 0.0
    %200 = vmatprep.subr.mxu0 0.0
    %201 = vmatpush1.msra.mxu0 0.0
    %202 = vmatprep.subr.mxu0 0.0
    %203 = vmatpush1.msra.mxu0 0.0
    %204 = vmatprep.subr.mxu0 0.0
    %205 = vmatpush1.msra.mxu0 0.0
    %206 = vmatprep.subr.mxu0 0.0
    %207 = vmatpush1.msra.mxu0 0.0
    %208 = vmatprep.subr.mxu0 0.0
    %209 = vmatpush1.msra.mxu0 0.0
    %210 = vmatprep.subr.mxu0 0.0
    %211 = vmatpush1.msra.mxu0 0.0
    %212 = vmatprep.subr.mxu0 0.0
    %213 = vmatpush1.msra.mxu0 0.0
    %214 = vmatprep.subr.mxu0 0.0
    %215 = vmatpush1.msra.mxu0 0.0
    %216 = vmatprep.subr.mxu0 0.0
    %217 = vmatpush1.msra.mxu0 0.0
    %218 = vmatprep.subr.mxu0 0.0
    %219 = vmatpush1.msra.mxu0 0.0
    %220 = vmatprep.subr.mxu0 0.0
    %221 = vmatpush1.msra.mxu0 0.0
    %222 = vmatprep.mubr.f32.mxu0 0.0
    %223 = vmatmul.mubr.f32.gmra.mrb[0].mxu0 %v152
    %v224 = vpop.f32.mrb[0].mxu0
    %v225 = vadd.f32 %v149, %v224
    %v226 = vpop.f32.mrb[0].mxu0
    %227 = vdwg.mxu0
    %229 = vrot.lane.b32.xlu0 %v225, 4
    %v230 = vpop.permute.xlu0 %229
    %v232 = vsel %vm150, %v134, %v230
    %vm233 = vcmask 179200
    %234 = vst.msk [vmem:[#allocation2] sm:$0xff] %vm233, %v232
    // Predicated region
    $region30: #{tpu_custom_call.1} parent=1 // pred_check
      _
    $region31: #{tpu_custom_call.1} parent=1 // pred_check_branch
      %236 = sbr.rel (0) target = $region33
    $region32: #{tpu_custom_call.1} parent=1 // pred_region
      %s238 = ssub.s32 128, 128
      %239 = vsyncadd [#allocation3], %s238
      %s241 = sshll.u32 [#allocation2], 4
      %s242 = int_to_ptr.vmem [resolvable:$true] %s241
      %244 = dma.vmem_to_hbm [thread:$0]  %s242, 128, %s7, [#allocation3]
    $region33: #{tpu_custom_call.1} parent=1 // pred_fallthru
      _
    // Predicated region
    $region34: #{tpu_custom_call.1} parent=1 // pred_check
      _
    $region35: #{tpu_custom_call.1} parent=1 // pred_check_branch
      %246 = sbr.rel (0) target = $region37
    $region36: #{tpu_custom_call.1} parent=1 // pred_region
      %247 = dma.done [#allocation3], 128
    $region37: #{tpu_custom_call.1} parent=1 // pred_fallthru
      _
    %248 = vsyncpa [#allocation3], 1

</llo_original>
